<compile_context>
chip_gen: v7x
topology: tpu7x:2x2x1
jax: 0.10.0
libtpu: 0.0.40
codegen_flags: <defaults>
</compile_context>

<pallas_src>
import functools

import jax
import jax.numpy as jnp
from jax.experimental import pallas as pl
from jax.experimental.pallas import tpu as pltpu

HALO = 128  # lane-aligned halo width; >= K-1 for every layer (K <= 15)


def _round_up(x, m):
    return ((x + m - 1) // m) * m


def _cdiv(a, b):
    return -(-a // b)


# ----------------------------------------------------------------------------
# Pallas kernel: stride-1 1-D conv time-tile (+ bias + LeakyReLU), time on
# lanes, lane-dense loads/stores.
# ----------------------------------------------------------------------------
def _conv1d_kernel(xa_ref, xb_ref, w_ref, b_ref, o_ref, tail_ref, *,
                   kernel_size, neg_slope, chunk):
    """
    xa_ref:   (1, Cin, TT)        body of the padded input window
    xb_ref:   (1, Cin, HALO)      next HALO input columns (halo)
    w_ref:    (K, Cout, Cin)      dense per-tap weights (block-diag if grouped)
    b_ref:    (Cout, 1)           f32 bias
    o_ref:    (1, Cout, TT)
    tail_ref: (Cin, chunk+HALO)   VMEM scratch: window of the last lane chunk
    """
    cin = xa_ref.shape[1]
    cout = o_ref.shape[1]
    tt = o_ref.shape[2]
    nchunks = tt // chunk
    K = kernel_size

    # Stitch only the last chunk's window (body tail + halo); all other chunks
    # read their tap windows directly from xa_ref (no full-tile VMEM copy).
    tail_ref[:, 0:chunk] = xa_ref[0, :, tt - chunk:tt]
    tail_ref[:, chunk:chunk + HALO] = xb_ref[0, :, :]

    bias = b_ref[...]  # (Cout, 1): lane-broadcast on the add below

    for c in range(nchunks):
        last = c == nchunks - 1
        acc = jnp.zeros((cout, chunk), jnp.float32)
        for k in range(K):
            if last:
                xk = tail_ref[:, k:k + chunk]
            else:
                xk = xa_ref[0, :, c * chunk + k:c * chunk + k + chunk]
            if cin == 1:
                # layer_0: rank-1 taps would waste the MXU; VPU broadcast FMA.
                acc = acc + (w_ref[k].astype(jnp.float32)
                             * xk.astype(jnp.float32))
            else:
                acc = acc + jnp.dot(w_ref[k], xk,
                                    preferred_element_type=jnp.float32)
        acc = acc + bias
        if neg_slope is not None:
            acc = jnp.where(acc >= 0, acc, neg_slope * acc)
        # Lane-dense store: chunk is a multiple of 128, Cout is the full dim.
        o_ref[0, :, c * chunk:(c + 1) * chunk] = acc.astype(o_ref.dtype)


def _pick_tiles(t_out, cout, time_tile):
    """Lane chunk keeps the (Cout, chunk) f32 accumulator ~<= 64 KiB (16
    vregs); the time tile is as large as useful to amortize grid-step
    overhead without over-padding short sequences."""
    if cout <= 32:
        chunk = 512
    elif cout <= 64:
        chunk = 256
    else:
        chunk = 128
    tt = min(_round_up(max(time_tile, chunk), chunk),
             _round_up(max(t_out, 1), chunk))
    return max(tt, chunk), chunk


def pallas_conv1d(x_ncl, w_oik, b, *, kernel_size, groups, pad, pad_mode,
                  neg_slope, time_tile=2048, compute_dtype=jnp.bfloat16):
    """Grouped stride-1 conv (+bias, +optional LeakyReLU) on an NCL input.

    x_ncl:  (B, Cin, T)
    w_oik:  (Cout, Cin/groups, K)   -- PyTorch Conv1d weight layout
    b:      (Cout,)
    returns (B, Cout, T_out), T_out = T + 2*pad - K + 1, dtype = compute_dtype.
    """
    B, Cin, T = x_ncl.shape
    Cout = w_oik.shape[0]
    K = kernel_size
    T_out = T + 2 * pad - K + 1

    tt, chunk = _pick_tiles(T_out, Cout, time_tile)
    nt = _cdiv(T_out, tt)
    L = nt * tt + HALO  # padded input length as seen by the kernel

    # Conv padding (reflect for layer_0, zeros elsewhere) + zero tail to L.
    # TODO(synk): fold padding into the kernel (edge masking) instead of
    # materializing a padded activation copy in HBM every layer.
    tail = L - (T + 2 * pad)
    x = x_ncl.astype(compute_dtype)
    if pad_mode == "constant":
        xp = jnp.pad(x, ((0, 0), (0, 0), (pad, pad + tail)))
    else:
        xp = jnp.pad(x, ((0, 0), (0, 0), (pad, pad)), mode=pad_mode)
        xp = jnp.pad(xp, ((0, 0), (0, 0), (0, tail)))

    # PyTorch (Cout, Cin_g, K) -> per-tap dense (K, Cout, Cin); block-diagonal
    # expansion for grouped layers so each tap is one full-width MXU matmul.
    cin_g = Cin // groups
    cout_g = Cout // groups
    if groups == 1:
        w_koi = jnp.transpose(w_oik, (2, 0, 1))               # (K, Cout, Cin)
    else:
        wg = w_oik.reshape(groups, cout_g, cin_g, K)          # (g, o, i, K)
        eye = jnp.eye(groups, dtype=w_oik.dtype)
        w_koi = jnp.einsum("goik,gh->kgohi", wg, eye).reshape(K, Cout, Cin)
    w_koi = w_koi.astype(compute_dtype)
    b2 = b.reshape(Cout, 1).astype(jnp.float32)

    kern = functools.partial(_conv1d_kernel, kernel_size=K,
                             neg_slope=neg_slope, chunk=chunk)

    csz = jnp.dtype(compute_dtype).itemsize
    cost = pl.CostEstimate(
        flops=int(2 * B * nt * tt * Cin * Cout * K),
        transcendentals=0,
        bytes_accessed=int(B * Cin * (L + nt * HALO) * csz    # body + halo
                           + K * Cout * Cin * csz             # weights (once)
                           + B * Cout * nt * tt * csz),       # output
    )

    # VMEM budget from the actual (double-buffered) block footprint (v7x has
    # only 64 MiB/TC, so no hard-coded large limit).
    per_step = (Cin * (tt + HALO) + K * Cout * Cin + Cout * tt) * csz
    scratch_bytes = Cin * (chunk + HALO) * csz + Cout * 4
    vmem_limit = int(min(32 << 20, max(16 << 20, 4 * per_step + scratch_bytes)))

    halo_blocks = tt // HALO

    out = pl.pallas_call(
        kern,
        out_shape=jax.ShapeDtypeStruct((B, Cout, nt * tt), compute_dtype),
        grid=(B, nt),
        in_specs=[
            pl.BlockSpec((1, Cin, tt), lambda bi, ti: (bi, 0, ti)),
            pl.BlockSpec((1, Cin, HALO),
                         lambda bi, ti, r=halo_blocks: (bi, 0, (ti + 1) * r)),
            pl.BlockSpec((K, Cout, Cin), lambda bi, ti: (0, 0, 0)),
            pl.BlockSpec((Cout, 1), lambda bi, ti: (0, 0)),
        ],
        out_specs=pl.BlockSpec((1, Cout, tt), lambda bi, ti: (bi, 0, ti)),
        scratch_shapes=[pltpu.VMEM((Cin, chunk + HALO), compute_dtype)],
        compiler_params=pltpu.CompilerParams(
            dimension_semantics=("parallel", "parallel"),
            vmem_limit_bytes=vmem_limit,
        ),
        cost_estimate=cost,
    )(xp, xp, w_koi, b2)

    if nt * tt != T_out:
        out = out[:, :, :T_out]
    return out


# ----------------------------------------------------------------------------
# Parameter construction (deterministic, mimics weight_norm(nn.Conv1d(...)))
# ----------------------------------------------------------------------------
def make_wn_conv_params(key, cout, cin_g, ksize):
    kv, kg, kb = jax.random.split(key, 3)
    v = jax.random.normal(kv, (cout, cin_g, ksize), jnp.float32) * 0.1
    g = jax.random.uniform(kg, (cout,), jnp.float32, minval=0.5, maxval=1.5)
    b = jax.random.normal(kb, (cout,), jnp.float32) * 0.1
    norm = jnp.sqrt(jnp.sum(v * v, axis=(1, 2), keepdims=True) + 1e-12)
    w = g[:, None, None] * v / norm  # weight-norm reparametrization
    return w, b


def build_nlayer_discriminator(ndf, n_layers, downsampling_factor, key):
    """Replicates NLayerDiscriminator.__init__ channel / kernel bookkeeping."""
    # TODO(synk): downsampling_factor > 1 (strided convs) not supported; the
    # reference module is only shape-consistent for downsampling_factor == 1.
    assert downsampling_factor == 1
    layers = []  # each: dict(pad, pad_mode, k, groups, act, w, b)
    keys = jax.random.split(key, n_layers + 3)

    # layer_0: ReflectionPad1d(7) + WNConv1d(1, ndf, 15) + LeakyReLU(0.2)
    w, b = make_wn_conv_params(keys[0], ndf, 1, 15)
    layers.append(dict(pad=7, pad_mode="reflect", k=15, groups=1, act=True,
                       w=w, b=b))

    nf = ndf
    stride = downsampling_factor
    nf_prev = nf
    for n in range(1, n_layers + 1):
        nf_prev = nf
        nf = min(nf * stride, 1024)
        groups = nf_prev // 4
        ksize = stride * 10 + 1
        w, b = make_wn_conv_params(keys[n], nf, nf_prev // groups, ksize)
        layers.append(dict(pad=stride * 5, pad_mode="constant", k=ksize,
                           groups=groups, act=True, w=w, b=b))

    nf_out = min(nf * 2, 1024)
    # layer_{n_layers+1}: WNConv1d(nf_prev, nf_out, 5, 1, 2) + LeakyReLU
    w, b = make_wn_conv_params(keys[n_layers + 1], nf_out, nf_prev, 5)
    layers.append(dict(pad=2, pad_mode="constant", k=5, groups=1, act=True,
                       w=w, b=b))

    # layer_{n_layers+2}: WNConv1d(nf_out, 1, 3, 1, 1)  (no activation)
    w, b = make_wn_conv_params(keys[n_layers + 2], 1, nf_out, 3)
    layers.append(dict(pad=1, pad_mode="constant", k=3, groups=1, act=False,
                       w=w, b=b))
    return layers


# ----------------------------------------------------------------------------
# Forward pass (list of per-layer outputs, NCL like PyTorch — no transposes)
# ----------------------------------------------------------------------------
def nlayer_discriminator_forward(x_ncl, layers, *, time_tile=2048,
                                 compute_dtype=jnp.bfloat16):
    x = x_ncl
    results = []
    for cfg in layers:
        x = pallas_conv1d(
            x, cfg["w"], cfg["b"],
            kernel_size=cfg["k"], groups=cfg["groups"],
            pad=cfg["pad"], pad_mode=cfg["pad_mode"],
            neg_slope=0.2 if cfg["act"] else None,
            time_tile=time_tile, compute_dtype=compute_dtype,
        )
        results.append(x)  # already NCL; no per-layer transposes
    return results


# ----------------------------------------------------------------------------
# Pure-JAX reference (for correctness check only)
# ----------------------------------------------------------------------------
def reference_forward(x_ncl, layers):
    x = x_ncl
    results = []
    for cfg in layers:
        xp = jnp.pad(x, ((0, 0), (0, 0), (cfg["pad"], cfg["pad"])),
                     mode=cfg["pad_mode"])
        y = jax.lax.conv_general_dilated(
            xp, cfg["w"], window_strides=(1,), padding="VALID",
            dimension_numbers=("NCH", "OIH", "NCH"),
            feature_group_count=cfg["groups"],
        )
        y = y + cfg["b"][None, :, None]
        if cfg["act"]:
            y = jnp.where(y >= 0, y, 0.2 * y)
        x = y
        results.append(y)
    return results


if __name__ == "__main__":
    ndf = 8
    n_layers = 2
    downsampling_factor = 1
    B, T = 2, 64

    key = jax.random.PRNGKey(0)
    k_params, k_input, k_input2 = jax.random.split(key, 3)

    layers = build_nlayer_discriminator(ndf, n_layers, downsampling_factor,
                                        k_params)

    # --- config 1: small input, f32 path, tight check ---
    x = jax.random.normal(k_input, (B, 1, T), jnp.float32)
    refs = reference_forward(x, layers)

    outs = nlayer_discriminator_forward(x, layers, compute_dtype=jnp.float32)
    outs = [jax.block_until_ready(o) for o in outs]
    for o, r in zip(outs, refs):
        assert o.shape == r.shape, (o.shape, r.shape)
        assert jnp.allclose(o, r, atol=1e-4, rtol=1e-4), \
            float(jnp.max(jnp.abs(o - r)))

    # --- config 1, bf16 default path (f32 accumulation; loose tolerance) ---
    outs_bf16 = nlayer_discriminator_forward(x, layers)
    outs_bf16 = [jax.block_until_ready(o) for o in outs_bf16]
    for o, r in zip(outs_bf16, refs):
        assert o.shape == r.shape, (o.shape, r.shape)
        err = float(jnp.max(jnp.abs(o.astype(jnp.float32) - r)))
        scale = float(jnp.max(jnp.abs(r))) + 1e-6
        assert err / scale < 0.1, (err, scale)

    # --- config 2: longer sequence — exercises multi-tile grid, multi-chunk
    #     inner loop and the output tail slice ---
    x2 = jax.random.normal(k_input2, (1, 1, 1100), jnp.float32)
    refs2 = reference_forward(x2, layers)
    outs2 = nlayer_discriminator_forward(x2, layers, time_tile=1024,
                                         compute_dtype=jnp.float32)
    outs2 = [jax.block_until_ready(o) for o in outs2]
    for o, r in zip(outs2, refs2):
        assert o.shape == r.shape, (o.shape, r.shape)
        assert jnp.allclose(o, r, atol=1e-4, rtol=1e-4), \
            float(jnp.max(jnp.abs(o - r)))

    print("KERNEL_OK")
</pallas_src>

<mosaic_0001>
module attributes {stable_mosaic.version = 11 : i64} {
  func.func @_conv1d_kernel(%arg0: i32, %arg1: i32, %arg2: memref<1x1x512xf32, #tpu.memory_space<vmem>>, %arg3: memref<1x1x128xf32, #tpu.memory_space<vmem>>, %arg4: memref<15x8x1xf32, #tpu.memory_space<vmem>>, %arg5: memref<8x1xf32, #tpu.memory_space<vmem>>, %arg6: memref<1x8x512xf32, #tpu.memory_space<vmem>>, %arg7: memref<1x640xf32, #tpu.memory_space<vmem>>) attributes {dimension_semantics = [#tpu.dimension_semantics<parallel>, #tpu.dimension_semantics<parallel>], iteration_bounds = array<i64: 2, 1>, scalar_prefetch = 0 : i64, scratch_operands = 1 : i64, tpu.core_type = #tpu.core_type<tc>, window_params = [{transform_indices = @transform_0, window_bounds = array<i64: 1, 1, 512>}, {transform_indices = @transform_1, window_bounds = array<i64: 1, 1, 128>}, {pipeline_mode = #tpu.pipeline_mode<synchronous>, transform_indices = @transform_2, window_bounds = array<i64: 15, 8, 1>}, {pipeline_mode = #tpu.pipeline_mode<synchronous>, transform_indices = @transform_3, window_bounds = array<i64: 8, 1>}, {transform_indices = @transform_4, window_bounds = array<i64: 1, 8, 512>}]} {
    %c0 = arith.constant 0 : index
    %c0_0 = arith.constant 0 : index
    %c0_1 = arith.constant 0 : index
    %0 = vector.load %arg2[%c0, %c0_0, %c0_1] : memref<1x1x512xf32, #tpu.memory_space<vmem>>, vector<1x1x512xf32>
    %1 = vector.shape_cast %0 : vector<1x1x512xf32> to vector<1x512xf32>
    %c0_2 = arith.constant 0 : index
    %c0_3 = arith.constant 0 : index
    %2 = vector.load %arg7[%c0_2, %c0_3] : memref<1x640xf32, #tpu.memory_space<vmem>>, vector<1x512xf32>
    tpu.vector_store %arg7[%c0_2, %c0_3], %1 {strides = array<i32>} : memref<1x640xf32, #tpu.memory_space<vmem>>, vector<1x512xf32>,
    %c0_4 = arith.constant 0 : index
    %c0_5 = arith.constant 0 : index
    %c0_6 = arith.constant 0 : index
    %3 = vector.load %arg3[%c0_4, %c0_5, %c0_6] : memref<1x1x128xf32, #tpu.memory_space<vmem>>, vector<1x1x128xf32>
    %4 = vector.shape_cast %3 : vector<1x1x128xf32> to vector<1x128xf32>
    %c0_7 = arith.constant 0 : index
    %c512 = arith.constant 512 : index
    %5 = vector.load %arg7[%c0_7, %c512] : memref<1x640xf32, #tpu.memory_space<vmem>>, vector<1x128xf32>
    tpu.vector_store %arg7[%c0_7, %c512], %4 {strides = array<i32>} : memref<1x640xf32, #tpu.memory_space<vmem>>, vector<1x128xf32>,
    %c0_8 = arith.constant 0 : index
    %c0_9 = arith.constant 0 : index
    %6 = vector.load %arg5[%c0_8, %c0_9] : memref<8x1xf32, #tpu.memory_space<vmem>>, vector<8x1xf32>
    %cst = arith.constant 0.000000e+00 : f32
    %7 = vector.broadcast %cst : f32 to vector<8x512xf32>
    %c0_10 = arith.constant 0 : index
    %c0_11 = arith.constant 0 : index
    %8 = vector.load %arg7[%c0_10, %c0_11] : memref<1x640xf32, #tpu.memory_space<vmem>>, vector<1x512xf32>
    %c0_12 = arith.constant 0 : index
    %c0_13 = arith.constant 0 : index
    %c0_14 = arith.constant 0 : index
    %9 = vector.load %arg4[%c0_12, %c0_13, %c0_14] : memref<15x8x1xf32, #tpu.memory_space<vmem>>, vector<1x8x1xf32>
    %10 = vector.shape_cast %9 : vector<1x8x1xf32> to vector<8x1xf32>
    %11 = vector.broadcast %10 : vector<8x1xf32> to vector<8x512xf32>
    %12 = vector.broadcast %8 : vector<1x512xf32> to vector<8x512xf32>
    %13 = arith.mulf %11, %12 : vector<8x512xf32>
    %14 = arith.addf %7, %13 : vector<8x512xf32>
    %c0_15 = arith.constant 0 : index
    %c1 = arith.constant 1 : index
    %15 = vector.load %arg7[%c0_15, %c1] : memref<1x640xf32, #tpu.memory_space<vmem>>, vector<1x512xf32>
    %c1_16 = arith.constant 1 : index
    %c0_17 = arith.constant 0 : index
    %c0_18 = arith.constant 0 : index
    %16 = vector.load %arg4[%c1_16, %c0_17, %c0_18] : memref<15x8x1xf32, #tpu.memory_space<vmem>>, vector<1x8x1xf32>
    %17 = vector.shape_cast %16 : vector<1x8x1xf32> to vector<8x1xf32>
    %18 = vector.broadcast %17 : vector<8x1xf32> to vector<8x512xf32>
    %19 = vector.broadcast %15 : vector<1x512xf32> to vector<8x512xf32>
    %20 = arith.mulf %18, %19 : vector<8x512xf32>
    %21 = arith.addf %14, %20 : vector<8x512xf32>
    %c0_19 = arith.constant 0 : index
    %c2 = arith.constant 2 : index
    %22 = vector.load %arg7[%c0_19, %c2] : memref<1x640xf32, #tpu.memory_space<vmem>>, vector<1x512xf32>
    %c2_20 = arith.constant 2 : index
    %c0_21 = arith.constant 0 : index
    %c0_22 = arith.constant 0 : index
    %23 = vector.load %arg4[%c2_20, %c0_21, %c0_22] : memref<15x8x1xf32, #tpu.memory_space<vmem>>, vector<1x8x1xf32>
    %24 = vector.shape_cast %23 : vector<1x8x1xf32> to vector<8x1xf32>
    %25 = vector.broadcast %24 : vector<8x1xf32> to vector<8x512xf32>
    %26 = vector.broadcast %22 : vector<1x512xf32> to vector<8x512xf32>
    %27 = arith.mulf %25, %26 : vector<8x512xf32>
    %28 = arith.addf %21, %27 : vector<8x512xf32>
    %c0_23 = arith.constant 0 : index
    %c3 = arith.constant 3 : index
    %29 = vector.load %arg7[%c0_23, %c3] : memref<1x640xf32, #tpu.memory_space<vmem>>, vector<1x512xf32>
    %c3_24 = arith.constant 3 : index
    %c0_25 = arith.constant 0 : index
    %c0_26 = arith.constant 0 : index
    %30 = vector.load %arg4[%c3_24, %c0_25, %c0_26] : memref<15x8x1xf32, #tpu.memory_space<vmem>>, vector<1x8x1xf32>
    %31 = vector.shape_cast %30 : vector<1x8x1xf32> to vector<8x1xf32>
    %32 = vector.broadcast %31 : vector<8x1xf32> to vector<8x512xf32>
    %33 = vector.broadcast %29 : vector<1x512xf32> to vector<8x512xf32>
    %34 = arith.mulf %32, %33 : vector<8x512xf32>
    %35 = arith.addf %28, %34 : vector<8x512xf32>
    %c0_27 = arith.constant 0 : index
    %c4 = arith.constant 4 : index
    %36 = vector.load %arg7[%c0_27, %c4] : memref<1x640xf32, #tpu.memory_space<vmem>>, vector<1x512xf32>
    %c4_28 = arith.constant 4 : index
    %c0_29 = arith.constant 0 : index
    %c0_30 = arith.constant 0 : index
    %37 = vector.load %arg4[%c4_28, %c0_29, %c0_30] : memref<15x8x1xf32, #tpu.memory_space<vmem>>, vector<1x8x1xf32>
    %38 = vector.shape_cast %37 : vector<1x8x1xf32> to vector<8x1xf32>
    %39 = vector.broadcast %38 : vector<8x1xf32> to vector<8x512xf32>
    %40 = vector.broadcast %36 : vector<1x512xf32> to vector<8x512xf32>
    %41 = arith.mulf %39, %40 : vector<8x512xf32>
    %42 = arith.addf %35, %41 : vector<8x512xf32>
    %c0_31 = arith.constant 0 : index
    %c5 = arith.constant 5 : index
    %43 = vector.load %arg7[%c0_31, %c5] : memref<1x640xf32, #tpu.memory_space<vmem>>, vector<1x512xf32>
    %c5_32 = arith.constant 5 : index
    %c0_33 = arith.constant 0 : index
    %c0_34 = arith.constant 0 : index
    %44 = vector.load %arg4[%c5_32, %c0_33, %c0_34] : memref<15x8x1xf32, #tpu.memory_space<vmem>>, vector<1x8x1xf32>
    %45 = vector.shape_cast %44 : vector<1x8x1xf32> to vector<8x1xf32>
    %46 = vector.broadcast %45 : vector<8x1xf32> to vector<8x512xf32>
    %47 = vector.broadcast %43 : vector<1x512xf32> to vector<8x512xf32>
    %48 = arith.mulf %46, %47 : vector<8x512xf32>
    %49 = arith.addf %42, %48 : vector<8x512xf32>
    %c0_35 = arith.constant 0 : index
    %c6 = arith.constant 6 : index
    %50 = vector.load %arg7[%c0_35, %c6] : memref<1x640xf32, #tpu.memory_space<vmem>>, vector<1x512xf32>
    %c6_36 = arith.constant 6 : index
    %c0_37 = arith.constant 0 : index
    %c0_38 = arith.constant 0 : index
    %51 = vector.load %arg4[%c6_36, %c0_37, %c0_38] : memref<15x8x1xf32, #tpu.memory_space<vmem>>, vector<1x8x1xf32>
    %52 = vector.shape_cast %51 : vector<1x8x1xf32> to vector<8x1xf32>
    %53 = vector.broadcast %52 : vector<8x1xf32> to vector<8x512xf32>
    %54 = vector.broadcast %50 : vector<1x512xf32> to vector<8x512xf32>
    %55 = arith.mulf %53, %54 : vector<8x512xf32>
    %56 = arith.addf %49, %55 : vector<8x512xf32>
    %c0_39 = arith.constant 0 : index
    %c7 = arith.constant 7 : index
    %57 = vector.load %arg7[%c0_39, %c7] : memref<1x640xf32, #tpu.memory_space<vmem>>, vector<1x512xf32>
    %c7_40 = arith.constant 7 : index
    %c0_41 = arith.constant 0 : index
    %c0_42 = arith.constant 0 : index
    %58 = vector.load %arg4[%c7_40, %c0_41, %c0_42] : memref<15x8x1xf32, #tpu.memory_space<vmem>>, vector<1x8x1xf32>
    %59 = vector.shape_cast %58 : vector<1x8x1xf32> to vector<8x1xf32>
    %60 = vector.broadcast %59 : vector<8x1xf32> to vector<8x512xf32>
    %61 = vector.broadcast %57 : vector<1x512xf32> to vector<8x512xf32>
    %62 = arith.mulf %60, %61 : vector<8x512xf32>
    %63 = arith.addf %56, %62 : vector<8x512xf32>
    %c0_43 = arith.constant 0 : index
    %c8 = arith.constant 8 : index
    %64 = vector.load %arg7[%c0_43, %c8] : memref<1x640xf32, #tpu.memory_space<vmem>>, vector<1x512xf32>
    %c8_44 = arith.constant 8 : index
    %c0_45 = arith.constant 0 : index
    %c0_46 = arith.constant 0 : index
    %65 = vector.load %arg4[%c8_44, %c0_45, %c0_46] : memref<15x8x1xf32, #tpu.memory_space<vmem>>, vector<1x8x1xf32>
    %66 = vector.shape_cast %65 : vector<1x8x1xf32> to vector<8x1xf32>
    %67 = vector.broadcast %66 : vector<8x1xf32> to vector<8x512xf32>
    %68 = vector.broadcast %64 : vector<1x512xf32> to vector<8x512xf32>
    %69 = arith.mulf %67, %68 : vector<8x512xf32>
    %70 = arith.addf %63, %69 : vector<8x512xf32>
    %c0_47 = arith.constant 0 : index
    %c9 = arith.constant 9 : index
    %71 = vector.load %arg7[%c0_47, %c9] : memref<1x640xf32, #tpu.memory_space<vmem>>, vector<1x512xf32>
    %c9_48 = arith.constant 9 : index
    %c0_49 = arith.constant 0 : index
    %c0_50 = arith.constant 0 : index
    %72 = vector.load %arg4[%c9_48, %c0_49, %c0_50] : memref<15x8x1xf32, #tpu.memory_space<vmem>>, vector<1x8x1xf32>
    %73 = vector.shape_cast %72 : vector<1x8x1xf32> to vector<8x1xf32>
    %74 = vector.broadcast %73 : vector<8x1xf32> to vector<8x512xf32>
    %75 = vector.broadcast %71 : vector<1x512xf32> to vector<8x512xf32>
    %76 = arith.mulf %74, %75 : vector<8x512xf32>
    %77 = arith.addf %70, %76 : vector<8x512xf32>
    %c0_51 = arith.constant 0 : index
    %c10 = arith.constant 10 : index
    %78 = vector.load %arg7[%c0_51, %c10] : memref<1x640xf32, #tpu.memory_space<vmem>>, vector<1x512xf32>
    %c10_52 = arith.constant 10 : index
    %c0_53 = arith.constant 0 : index
    %c0_54 = arith.constant 0 : index
    %79 = vector.load %arg4[%c10_52, %c0_53, %c0_54] : memref<15x8x1xf32, #tpu.memory_space<vmem>>, vector<1x8x1xf32>
    %80 = vector.shape_cast %79 : vector<1x8x1xf32> to vector<8x1xf32>
    %81 = vector.broadcast %80 : vector<8x1xf32> to vector<8x512xf32>
    %82 = vector.broadcast %78 : vector<1x512xf32> to vector<8x512xf32>
    %83 = arith.mulf %81, %82 : vector<8x512xf32>
    %84 = arith.addf %77, %83 : vector<8x512xf32>
    %c0_55 = arith.constant 0 : index
    %c11 = arith.constant 11 : index
    %85 = vector.load %arg7[%c0_55, %c11] : memref<1x640xf32, #tpu.memory_space<vmem>>, vector<1x512xf32>
    %c11_56 = arith.constant 11 : index
    %c0_57 = arith.constant 0 : index
    %c0_58 = arith.constant 0 : index
    %86 = vector.load %arg4[%c11_56, %c0_57, %c0_58] : memref<15x8x1xf32, #tpu.memory_space<vmem>>, vector<1x8x1xf32>
    %87 = vector.shape_cast %86 : vector<1x8x1xf32> to vector<8x1xf32>
    %88 = vector.broadcast %87 : vector<8x1xf32> to vector<8x512xf32>
    %89 = vector.broadcast %85 : vector<1x512xf32> to vector<8x512xf32>
    %90 = arith.mulf %88, %89 : vector<8x512xf32>
    %91 = arith.addf %84, %90 : vector<8x512xf32>
    %c0_59 = arith.constant 0 : index
    %c12 = arith.constant 12 : index
    %92 = vector.load %arg7[%c0_59, %c12] : memref<1x640xf32, #tpu.memory_space<vmem>>, vector<1x512xf32>
    %c12_60 = arith.constant 12 : index
    %c0_61 = arith.constant 0 : index
    %c0_62 = arith.constant 0 : index
    %93 = vector.load %arg4[%c12_60, %c0_61, %c0_62] : memref<15x8x1xf32, #tpu.memory_space<vmem>>, vector<1x8x1xf32>
    %94 = vector.shape_cast %93 : vector<1x8x1xf32> to vector<8x1xf32>
    %95 = vector.broadcast %94 : vector<8x1xf32> to vector<8x512xf32>
    %96 = vector.broadcast %92 : vector<1x512xf32> to vector<8x512xf32>
    %97 = arith.mulf %95, %96 : vector<8x512xf32>
    %98 = arith.addf %91, %97 : vector<8x512xf32>
    %c0_63 = arith.constant 0 : index
    %c13 = arith.constant 13 : index
    %99 = vector.load %arg7[%c0_63, %c13] : memref<1x640xf32, #tpu.memory_space<vmem>>, vector<1x512xf32>
    %c13_64 = arith.constant 13 : index
    %c0_65 = arith.constant 0 : index
    %c0_66 = arith.constant 0 : index
    %100 = vector.load %arg4[%c13_64, %c0_65, %c0_66] : memref<15x8x1xf32, #tpu.memory_space<vmem>>, vector<1x8x1xf32>
    %101 = vector.shape_cast %100 : vector<1x8x1xf32> to vector<8x1xf32>
    %102 = vector.broadcast %101 : vector<8x1xf32> to vector<8x512xf32>
    %103 = vector.broadcast %99 : vector<1x512xf32> to vector<8x512xf32>
    %104 = arith.mulf %102, %103 : vector<8x512xf32>
    %105 = arith.addf %98, %104 : vector<8x512xf32>
    %c0_67 = arith.constant 0 : index
    %c14 = arith.constant 14 : index
    %106 = vector.load %arg7[%c0_67, %c14] : memref<1x640xf32, #tpu.memory_space<vmem>>, vector<1x512xf32>
    %c14_68 = arith.constant 14 : index
    %c0_69 = arith.constant 0 : index
    %c0_70 = arith.constant 0 : index
    %107 = vector.load %arg4[%c14_68, %c0_69, %c0_70] : memref<15x8x1xf32, #tpu.memory_space<vmem>>, vector<1x8x1xf32>
    %108 = vector.shape_cast %107 : vector<1x8x1xf32> to vector<8x1xf32>
    %109 = vector.broadcast %108 : vector<8x1xf32> to vector<8x512xf32>
    %110 = vector.broadcast %106 : vector<1x512xf32> to vector<8x512xf32>
    %111 = arith.mulf %109, %110 : vector<8x512xf32>
    %112 = arith.addf %105, %111 : vector<8x512xf32>
    %113 = vector.broadcast %6 : vector<8x1xf32> to vector<8x512xf32>
    %114 = arith.addf %112, %113 : vector<8x512xf32>
    %cst_71 = arith.constant 0.000000e+00 : f32
    %115 = vector.broadcast %cst_71 : f32 to vector<8x512xf32>
    %116 = arith.cmpf oge, %114, %115 : vector<8x512xf32>
    %cst_72 = arith.constant 2.000000e-01 : f32
    %117 = vector.broadcast %cst_72 : f32 to vector<8x512xf32>
    %118 = arith.mulf %117, %114 : vector<8x512xf32>
    %119 = arith.select %116, %114, %118 : vector<8x512xi1>, vector<8x512xf32>
    %c0_73 = arith.constant 0 : index
    %c0_74 = arith.constant 0 : index
    %c0_75 = arith.constant 0 : index
    %120 = vector.load %arg6[%c0_73, %c0_74, %c0_75] : memref<1x8x512xf32, #tpu.memory_space<vmem>>, vector<1x8x512xf32>
    %121 = vector.shape_cast %120 : vector<1x8x512xf32> to vector<8x512xf32>
    %122 = vector.shape_cast %119 : vector<8x512xf32> to vector<1x8x512xf32>
    tpu.vector_store %arg6[%c0_73, %c0_74, %c0_75], %122 {strides = array<i32>} : memref<1x8x512xf32, #tpu.memory_space<vmem>>, vector<1x8x512xf32>,
    return
  }
  func.func @transform_0(%arg0: i32, %arg1: i32) -> (i32, i32, i32) {
    %c0_i32 = arith.constant 0 : i32
    %c0_i32_0 = arith.constant 0 : i32
    return %arg0, %c0_i32, %arg1 : i32, i32, i32
  }
  func.func @transform_1(%arg0: i32, %arg1: i32) -> (i32, i32, i32) {
    %c1_i32 = arith.constant 1 : i32
    %0 = arith.addi %arg1, %c1_i32 : i32
    %c4_i32 = arith.constant 4 : i32
    %1 = arith.muli %0, %c4_i32 : i32
    %c0_i32 = arith.constant 0 : i32
    %c0_i32_0 = arith.constant 0 : i32
    return %arg0, %c0_i32, %1 : i32, i32, i32
  }
  func.func @transform_2(%arg0: i32, %arg1: i32) -> (i32, i32, i32) {
    %c0_i32 = arith.constant 0 : i32
    %c0_i32_0 = arith.constant 0 : i32
    %c0_i32_1 = arith.constant 0 : i32
    %c0_i32_2 = arith.constant 0 : i32
    return %c0_i32, %c0_i32_0, %c0_i32_1 : i32, i32, i32
  }
  func.func @transform_3(%arg0: i32, %arg1: i32) -> (i32, i32) {
    %c0_i32 = arith.constant 0 : i32
    %c0_i32_0 = arith.constant 0 : i32
    %c0_i32_1 = arith.constant 0 : i32
    return %c0_i32, %c0_i32_0 : i32, i32
  }
  func.func @transform_4(%arg0: i32, %arg1: i32) -> (i32, i32, i32) {
    %c0_i32 = arith.constant 0 : i32
    %c0_i32_0 = arith.constant 0 : i32
    return %arg0, %c0_i32, %arg1 : i32, i32, i32
  }
}

</mosaic_0001>

<llo_original>
// kernel: tpu_custom_call.1
$region0: #{tpu_custom_call.1}
  #allocation0 [shape = 'u32[]', space=smem, size = 0x4, offset = 0x4, fixed_abs, tag = 'smem constant byte address 0x4 - core index']
  #allocation1 [shape = 'u32[144,128]{1,0:T(1,128)}', space=vmem, size = 0x12000, scoped, tag = 'internal scratch']
  #allocation2 [shape = 'f32[1,640]{1,0:T(1,128)}', space=vmem, size = 0xa00, scoped, tag = 'scratch operand']
  %s0 = inlined_call_operand.vmem [shape: f32[2,1,640], index: 0, kind: input, shape index: {}]
  %s1 = inlined_call_operand.vmem [shape: f32[2,1,640], index: 1, kind: input, shape index: {}]
  %s2 = inlined_call_operand.vmem [shape: f32[15,8,1], index: 2, kind: input, shape index: {}]
  %s3 = inlined_call_operand.vmem [shape: f32[8,1], index: 3, kind: input, shape index: {}]
  %s4 = inlined_call_operand.hbm [shape: f32[2,8,512], index: 4, kind: output, shape index: {}]
  %s5 = sld [smem:[#allocation0]]
  $region49: #{tpu_custom_call.1} parent=0
    _
  %s7 = ssub.s32 1, %s5
  %s8 = scalar_select 0, %s7, %s5
  $region1: #{tpu_custom_call.1} parent=0
    #allocation3 [shape = 'u8[32768]{0}', space=vmem, size = 0x8000, scoped, tag = 'output window, operand 0']
    #allocation4 [shape = 's32[2]{0}', space=sflag, size = 0x8, scoped, tag = 'scoped memory for tpu_custom_call.1']
    %9 = vsyncpa [#allocation4], 0
    %s10 = scalar_lea.sflag [#allocation4], 1
    %11 = vsyncpa %s10, 0
    loop: start=0, step=1, limit=4
    $region2: #{tpu_custom_call.1} parent=1 // loop_pre_header
      _
    $region3: #{tpu_custom_call.1} parent=1 // loop_header
      %s13 = sphi 0, %s17
      %p14 = scmp.ge.s32.totalorder %s13, 4
      %s20 = sphi 0, %s32
      %s21 = sphi 0, %s28
      %s22 = sphi 0, %s20
      %s23 = sphi 0, %s21
      %s24 = sphi 0, %s22
      %s25 = sphi 0, %s23
      %s37 = sphi 0, %s39
      %s40 = sphi 0, %s37
      %s41 = sphi 0, %s40
      %s57 = sphi 0, %s41
      %s69 = sphi 0, %s71
      %s72 = sphi 0, %s69
      %s73 = sphi 0, %s72
      %s89 = sphi 0, %s73
      %s93 = sphi 0, %s93
      %s95 = sphi 0, %s93
      %s96 = sphi 0, %s95
      %s110 = sphi 0, %s96
      %s114 = sphi 0, %s114
      %s116 = sphi 0, %s114
      %s117 = sphi 0, %s116
      %s131 = sphi 0, %s117
      %s139 = sphi 0, %s141
      %s142 = sphi 0, %s139
      %s143 = sphi 0, %s142
      %s159 = sphi 0, %s143
    $region4: #{tpu_custom_call.1} parent=1 // loop_header_branch
      %16 = sbr.rel (%p14) target = $region8
    $region5: #{tpu_custom_call.1} parent=1 // loop_body
      %s18 = ssub.s32 %s13, 1
      %s19 = ssub.s32 %s13, 2
      %s26 = sadd.s32 1, %s21
      %p27 = scmp.ge.s32.totalorder %s26, 1
      %s28 = scalar_select %p27, 0, %s26
      %s29 = sadd.s32 1, %s20
      %s30 = scalar_select %p27, %s29, %s20
      %p31 = scmp.ge.s32.totalorder %s30, 2
      %s32 = scalar_select %p31, 0, %s30
      %s33 = ssub.s32 %s20, %s32
      %s34 = ssub.s32 %s21, %s28
      %s35 = sor.u32 %s33, %s34
      %p36 = scmp.eq.s32.totalorder %s35, 0
      %s38 = sadd.s32 %s37, 1
      %s39 = scalar_select %p36, %s37, %s38
      %p42 = pneg %p36
      %p43 = scmp.eq.s32.totalorder %s13, 1
      %p44 = por %p42, %p43
      %p45 = scmp.ne.s32.totalorder %s37, %s40
      %p46 = scmp.eq.s32.totalorder %s13, 0
      %p47 = por %p45, %p46
      %p48 = scmp.ne.s32.totalorder %s37, %s40
      %p49 = scmp.eq.s32.totalorder %s18, 1
      %p50 = por %p48, %p49
      %p51 = scmp.ne.s32.totalorder %s40, %s41
      %p52 = scmp.eq.s32.totalorder %s18, 0
      %p53 = por %p51, %p52
      %p54 = scmp.ne.s32.totalorder %s40, %s41
      %p55 = scmp.eq.s32.totalorder %s19, 1
      %p56 = por %p54, %p55
      %p58 = scmp.ne.s32.totalorder %s41, %s57
      %p59 = scmp.eq.s32.totalorder %s19, 0
      %p60 = por %p58, %p59
      %s61 = sadd.s32 %s21, 1
      %s62 = smul.u32 %s61, 4
      %s63 = sadd.s32 %s28, 1
      %s64 = smul.u32 %s63, 4
      %s65 = ssub.s32 %s20, %s32
      %s66 = ssub.s32 %s62, %s64
      %s67 = sor.u32 %s65, %s66
      %p68 = scmp.eq.s32.totalorder %s67, 0
      %s70 = sadd.s32 %s69, 1
      %s71 = scalar_select %p68, %s69, %s70
      %p74 = pneg %p68
      %p75 = scmp.eq.s32.totalorder %s13, 1
      %p76 = por %p74, %p75
      %p77 = scmp.ne.s32.totalorder %s69, %s72
      %p78 = scmp.eq.s32.totalorder %s13, 0
      %p79 = por %p77, %p78
      %p80 = scmp.ne.s32.totalorder %s69, %s72
      %p81 = scmp.eq.s32.totalorder %s18, 1
      %p82 = por %p80, %p81
      %p83 = scmp.ne.s32.totalorder %s72, %s73
      %p84 = scmp.eq.s32.totalorder %s18, 0
      %p85 = por %p83, %p84
      %p86 = scmp.ne.s32.totalorder %s72, %s73
      %p87 = scmp.eq.s32.totalorder %s19, 1
      %p88 = por %p86, %p87
      %p90 = scmp.ne.s32.totalorder %s73, %s89
      %p91 = scmp.eq.s32.totalorder %s19, 0
      %p92 = por %p90, %p91
      %s94 = sadd.s32 %s93, 1
      %p97 = scmp.eq.s32.totalorder %s13, 1
      %p98 = scmp.ne.s32.totalorder %s93, %s95
      %p99 = scmp.eq.s32.totalorder %s13, 0
      %p100 = por %p98, %p99
      %p101 = scmp.ne.s32.totalorder %s93, %s95
      %p102 = scmp.eq.s32.totalorder %s18, 1
      %p103 = por %p101, %p102
      %p104 = scmp.ne.s32.totalorder %s95, %s96
      %p105 = scmp.eq.s32.totalorder %s18, 0
      %p106 = por %p104, %p105
      %p107 = scmp.ne.s32.totalorder %s95, %s96
      %p108 = scmp.eq.s32.totalorder %s19, 1
      %p109 = por %p107, %p108
      %p111 = scmp.ne.s32.totalorder %s96, %s110
      %p112 = scmp.eq.s32.totalorder %s19, 0
      %p113 = por %p111, %p112
      %s115 = sadd.s32 %s114, 1
      %p118 = scmp.eq.s32.totalorder %s13, 1
      %p119 = scmp.ne.s32.totalorder %s114, %s116
      %p120 = scmp.eq.s32.totalorder %s13, 0
      %p121 = por %p119, %p120
      %p122 = scmp.ne.s32.totalorder %s114, %s116
      %p123 = scmp.eq.s32.totalorder %s18, 1
      %p124 = por %p122, %p123
      %p125 = scmp.ne.s32.totalorder %s116, %s117
      %p126 = scmp.eq.s32.totalorder %s18, 0
      %p127 = por %p125, %p126
      %p128 = scmp.ne.s32.totalorder %s116, %s117
      %p129 = scmp.eq.s32.totalorder %s19, 1
      %p130 = por %p128, %p129
      %p132 = scmp.ne.s32.totalorder %s117, %s131
      %p133 = scmp.eq.s32.totalorder %s19, 0
      %p134 = por %p132, %p133
      %s135 = ssub.s32 %s20, %s32
      %s136 = ssub.s32 %s21, %s28
      %s137 = sor.u32 %s135, %s136
      %p138 = scmp.eq.s32.totalorder %s137, 0
      %s140 = sadd.s32 %s139, 1
      %s141 = scalar_select %p138, %s139, %s140
      %p144 = pneg %p138
      %p145 = scmp.eq.s32.totalorder %s13, 1
      %p146 = por %p144, %p145
      %p147 = scmp.ne.s32.totalorder %s139, %s142
      %p148 = scmp.eq.s32.totalorder %s13, 0
      %p149 = por %p147, %p148
      %p150 = scmp.ne.s32.totalorder %s139, %s142
      %p151 = scmp.eq.s32.totalorder %s18, 1
      %p152 = por %p150, %p151
      %p153 = scmp.ne.s32.totalorder %s142, %s143
      %p154 = scmp.eq.s32.totalorder %s18, 0
      %p155 = por %p153, %p154
      %p156 = scmp.ne.s32.totalorder %s142, %s143
      %p157 = scmp.eq.s32.totalorder %s19, 1
      %p158 = por %p156, %p157
      %p160 = scmp.ne.s32.totalorder %s143, %s159
      %p161 = scmp.eq.s32.totalorder %s19, 0
      %p162 = por %p160, %p161
      %p163 = scmp.le.s32.totalorder 1, %s13
      %p164 = scmp.lt.s32.totalorder %s13, 3
      %p165 = pnand %p163, %p164
      %p166 = pneg %p165
      // Predicated region
      $region9: #{tpu_custom_call.1} parent=5 // pred_check
        _
      $region10: #{tpu_custom_call.1} parent=5 // pred_check_branch
        %168 = sbr.rel (%p165) target = $region12
      $region11: #{tpu_custom_call.1} parent=5 // pred_region
        %s169 = ssub.s32 %s13, 1
        // Predicated region
        $region13: #{tpu_custom_call.1} parent=11 // pred_check
          %p170 = pneg %p106
        $region14: #{tpu_custom_call.1} parent=11 // pred_check_branch
          %172 = sbr.rel (%p170) target = $region16
        $region15: #{tpu_custom_call.1} parent=11 // pred_region
          _
        $region16: #{tpu_custom_call.1} parent=11 // pred_fallthru
          _
        // Predicated region
        $region17: #{tpu_custom_call.1} parent=11 // pred_check
          %p173 = pneg %p127
        $region18: #{tpu_custom_call.1} parent=11 // pred_check_branch
          %175 = sbr.rel (%p173) target = $region20
        $region19: #{tpu_custom_call.1} parent=11 // pred_region
          _
        $region20: #{tpu_custom_call.1} parent=11 // pred_fallthru
          _
      $region12: #{tpu_custom_call.1} parent=5 // pred_fallthru
        _
      %p176 = scmp.lt.s32.totalorder %s13, 2
      // Predicated region
      $region21: #{tpu_custom_call.1} parent=5 // pred_check
        %p177 = pneg %p176
      $region22: #{tpu_custom_call.1} parent=5 // pred_check_branch
        %179 = sbr.rel (%p177) target = $region24
      $region23: #{tpu_custom_call.1} parent=5 // pred_region
        // Predicated region
        $region25: #{tpu_custom_call.1} parent=23 // pred_check
          %p180 = pneg %p47
        $region26: #{tpu_custom_call.1} parent=23 // pred_check_branch
          %182 = sbr.rel (%p180) target = $region28
        $region27: #{tpu_custom_call.1} parent=23 // pred_region
          %s183 = smul.u32 4, %s21
          %s184 = ssub.s32 5, %s183
          %p185 = scmp.lt.s32.totalorder %s184, 4
          %s186 = scalar_select %p185, %s184, 4
          %s187 = smul.u32 16, %s186
          %p188 = scmp.lt.s32.totalorder %s20, 1
          %s189 = scalar_select %p188, %s20, 1
          %p190 = scmp.lt.s32.totalorder %s183, 4
          %s191 = scalar_select %p190, %s183, 4
          %s192 = smul.addr %s189, 5
          %s193 = sadd.s32 %s191, %s192
          %s194 = scalar_lea.vmem %s0, %s193
          %s195 = smul.u32 4, %s21
          %s196 = ssub.s32 5, %s195
          %p197 = scmp.lt.s32.totalorder %s196, 4
          %s198 = scalar_select %p197, %s196, 4
          %s199 = smul.u32 16, %s198
        $region28: #{tpu_custom_call.1} parent=23 // pred_fallthru
          _
        // Predicated region
        $region29: #{tpu_custom_call.1} parent=23 // pred_check
          %p200 = pneg %p79
        $region30: #{tpu_custom_call.1} parent=23 // pred_check_branch
          %202 = sbr.rel (%p200) target = $region32
        $region31: #{tpu_custom_call.1} parent=23 // pred_region
          %s203 = sadd.s32 %s21, 1
          %s204 = smul.u32 %s203, 4
          %p205 = scmp.lt.s32.totalorder %s20, 1
          %s206 = scalar_select %p205, %s20, 1
          %p207 = scmp.lt.s32.totalorder %s204, 4
          %s208 = scalar_select %p207, %s204, 4
          %s209 = smul.addr %s206, 5
          %s210 = sadd.s32 %s208, %s209
          %s211 = scalar_lea.vmem %s1, %s210
          %s212 = sadd.s32 %s21, 1
          %s213 = smul.u32 %s212, 4
        $region32: #{tpu_custom_call.1} parent=23 // pred_fallthru
          _
      $region24: #{tpu_custom_call.1} parent=5 // pred_fallthru
        _
      %p214 = scmp.le.s32.totalorder 1, %s13
      %p215 = scmp.lt.s32.totalorder %s13, 3
      %p216 = pnand %p214, %p215
      %p217 = pneg %p216
      // Predicated region
      $region33: #{tpu_custom_call.1} parent=5 // pred_check
        _
      $region34: #{tpu_custom_call.1} parent=5 // pred_check_branch
        %219 = sbr.rel (%p216) target = $region36
      $region35: #{tpu_custom_call.1} parent=5 // pred_region
        %s220 = ssub.s32 %s13, 1
        %s221 = smul.u32 4, %s23
        %s222 = ssub.s32 5, %s221
        %p223 = scmp.lt.s32.totalorder %s222, 4
        %s224 = scalar_select %p223, %s222, 4
        %s225 = smul.u32 16, %s224
        %p226 = scmp.lt.s32.totalorder %s22, 1
        %s227 = scalar_select %p226, %s22, 1
        %p228 = scmp.lt.s32.totalorder %s221, 4
        %s229 = scalar_select %p228, %s221, 4
        %s230 = smul.addr %s227, 5
        %s231 = sadd.s32 %s229, %s230
        %s232 = scalar_lea.vmem %s0, %s231
        %p233 = pneg %p53
        %p234 = pneg %p50
        %s235 = sadd.s32 %s23, 1
        %s236 = smul.u32 %s235, 4
        %p237 = scmp.lt.s32.totalorder %s22, 1
        %s238 = scalar_select %p237, %s22, 1
        %p239 = scmp.lt.s32.totalorder %s236, 4
        %s240 = scalar_select %p239, %s236, 4
        %s241 = smul.addr %s238, 5
        %s242 = sadd.s32 %s240, %s241
        %s243 = scalar_lea.vmem %s1, %s242
        %p244 = pneg %p85
        %p245 = pneg %p82
        %p246 = pneg %p106
        %p247 = pneg %p103
        %p248 = pneg %p127
        %p249 = pneg %p124
        %p250 = pneg %p155
        %p251 = pneg %p152
        %s252 = sand.u32 %s142, 1
        %s253 = scalar_lea.sflag [#allocation4], %s252
        %s254 = sand.u32 %s142, 1
        %s255 = smul.addr %s254, 32
        %s256 = scalar_lea.vmem [#allocation3], %s255
        %s257 = smul.u32 4, %s23
        %s258 = ssub.s32 5, %s257
        %p259 = scmp.lt.s32.totalorder %s258, 4
        %s260 = scalar_select %p259, %s258, 4
        %s261 = smul.u32 16, %s260
        %p262 = scmp.lt.s32.totalorder %s22, 1
        %s263 = scalar_select %p262, %s22, 1
        %p264 = scmp.lt.s32.totalorder %s257, 4
        %s265 = scalar_select %p264, %s257, 4
        %s266 = smul.addr %s263, 5
        %s267 = sadd.s32 %s265, %s266
        %s268 = scalar_lea.vmem %s0, %s267
        %s269 = smul.u32 4, %s23
        %s270 = ssub.s32 5, %s269
        %p271 = scmp.lt.s32.totalorder %s270, 4
        %s272 = scalar_select %p271, %s270, 4
        %s273 = smul.u32 16, %s272
        %s274 = sadd.s32 %s23, 1
        %s275 = smul.u32 %s274, 4
        %p276 = scmp.lt.s32.totalorder %s22, 1
        %s277 = scalar_select %p276, %s22, 1
        %p278 = scmp.lt.s32.totalorder %s275, 4
        %s279 = scalar_select %p278, %s275, 4
        %s280 = smul.addr %s277, 5
        %s281 = sadd.s32 %s279, %s280
        %s282 = scalar_lea.vmem %s1, %s281
        %s283 = sadd.s32 %s23, 1
        %s284 = smul.u32 %s283, 4
        %s285 = smul.u32 4, %s23
        %v286 = vld [vmem:[%s268] sm:$0xf]
        %v287 = vlaneseq
        %vm288 = vcmp.ge.s32.totalorder %v287, 0
        %vm289 = vcmp.lt.s32.totalorder %v287, 512
        %vm290 = vmand %vm288, %vm289
        %291 = vst.msk [vmem:[#allocation2] sm:$0xf] %vm290, %v286
        %v292 = vld [vmem:[%s282] sm:$0x1]
        %vm293 = vcmp.lt.s32.totalorder %v287, 128
        %vm294 = vmand %vm288, %vm293
        %295 = vst.msk [vmem:[#allocation2 + $0x4] sm:$0x1] %vm294, %v292
        %v296 = vld [vmem:[%s3] sm:$0xff]
        %v297 = vld [vmem:[#allocation2] sm:$0xf]
        %v298 = vld [vmem:[%s2] sm:$0xff]
        %300 = vset.pattern.permute.xlu0 0
        %301 = vperm.xlu0 %300, %v298
        %v302 = vpop.permute.xlu0 %301
        %v305 = vlaneseq
        %v306 = vshrl.u32 %v305, 7
        %v307 = vsub.s32 0, %v306
        %v308 = vrot.slane %v297, %v307
        %v309 = vlaneseq
        %v310 = vshrl.u32 %v309, 7
        %v311 = vsub.s32 1, %v310
        %v312 = vrot.slane %v297, %v311
        %v313 = vlaneseq
        %v314 = vshrl.u32 %v313, 7
        %v315 = vsub.s32 2, %v314
        %v316 = vrot.slane %v297, %v315
        %v317 = vlaneseq
        %v318 = vshrl.u32 %v317, 7
        %v319 = vsub.s32 3, %v318
        %v320 = vrot.slane %v297, %v319
        %v325 = vmul.f32 %v302, %v308
        %v326 = vmul.f32 %v302, %v312
        %v327 = vmul.f32 %v302, %v316
        %v328 = vmul.f32 %v302, %v320
        %v329 = vadd.f32 %v325, 0.0
        %v330 = vadd.f32 %v326, 0.0
        %v331 = vadd.f32 %v327, 0.0
        %v332 = vadd.f32 %v328, 0.0
        %v333 = vld [vmem:[#allocation2] sm:$0x1f]
        %s334 = scalar_lea.vmem %s2, 8
        %v335 = vld [vmem:[%s334] sm:$0xff]
        %337 = vset.pattern.permute.xlu0 0
        %338 = vperm.xlu0 %337, %v335
        %v339 = vpop.permute.xlu0 %338
        %v342 = vlaneseq
        %v343 = vshrl.u32 %v342, 7
        %v344 = vsub.s32 0, %v343
        %v345 = vrot.slane %v333, %v344
        %v346 = vlaneseq
        %v347 = vshrl.u32 %v346, 7
        %v348 = vsub.s32 1, %v347
        %v349 = vrot.slane %v333, %v348
        %v350 = vlaneseq
        %v351 = vshrl.u32 %v350, 7
        %v352 = vsub.s32 2, %v351
        %v353 = vrot.slane %v333, %v352
        %v354 = vlaneseq
        %v355 = vshrl.u32 %v354, 7
        %v356 = vsub.s32 3, %v355
        %v357 = vrot.slane %v333, %v356
        %v358 = vlaneseq
        %v359 = vshrl.u32 %v358, 7
        %v360 = vsub.s32 4, %v359
        %v361 = vrot.slane %v333, %v360
        %v367 = vmul.f32 %v339, %v345
        %v368 = vmul.f32 %v339, %v349
        %v369 = vmul.f32 %v339, %v353
        %v370 = vmul.f32 %v339, %v357
        %v371 = vmul.f32 %v339, %v361
        %377 = vrot.lane.b32.xlu0 %v367, 127
        %v378 = vpop.permute.xlu0 %377
        %379 = vrot.lane.b32.xlu0 %v368, 127
        %v380 = vpop.permute.xlu0 %379
        %381 = vrot.lane.b32.xlu0 %v369, 127
        %v382 = vpop.permute.xlu0 %381
        %383 = vrot.lane.b32.xlu0 %v370, 127
        %v384 = vpop.permute.xlu0 %383
        %385 = vrot.lane.b32.xlu0 %v371, 127
        %v386 = vpop.permute.xlu0 %385
        %vm387 = vcmask 1039360
        %v388 = vsel %vm387, %v378, %v380
        %v389 = vsel %vm387, %v380, %v382
        %v390 = vsel %vm387, %v382, %v384
        %v391 = vsel %vm387, %v384, %v386
        %v396 = vadd.f32 %v329, %v388
        %v397 = vadd.f32 %v330, %v389
        %v398 = vadd.f32 %v331, %v390
        %v399 = vadd.f32 %v332, %v391
        %s400 = scalar_lea.vmem %s2, 16
        %v401 = vld [vmem:[%s400] sm:$0xff]
        %403 = vset.pattern.permute.xlu0 0
        %404 = vperm.xlu0 %403, %v401
        %v405 = vpop.permute.xlu0 %404
        %v407 = vmul.f32 %v405, %v345
        %v408 = vmul.f32 %v405, %v349
        %v409 = vmul.f32 %v405, %v353
        %v410 = vmul.f32 %v405, %v357
        %v411 = vmul.f32 %v405, %v361
        %417 = vrot.lane.b32.xlu0 %v407, 126
        %v418 = vpop.permute.xlu0 %417
        %419 = vrot.lane.b32.xlu0 %v408, 126
        %v420 = vpop.permute.xlu0 %419
        %421 = vrot.lane.b32.xlu0 %v409, 126
        %v422 = vpop.permute.xlu0 %421
        %423 = vrot.lane.b32.xlu0 %v410, 126
        %v424 = vpop.permute.xlu0 %423
        %425 = vrot.lane.b32.xlu0 %v411, 126
        %v426 = vpop.permute.xlu0 %425
        %vm427 = vcmask 1031168
        %v428 = vsel %vm427, %v418, %v420
        %v429 = vsel %vm427, %v420, %v422
        %v430 = vsel %vm427, %v422, %v424
        %v431 = vsel %vm427, %v424, %v426
        %v436 = vadd.f32 %v396, %v428
        %v437 = vadd.f32 %v397, %v429
        %v438 = vadd.f32 %v398, %v430
        %v439 = vadd.f32 %v399, %v431
        %s440 = scalar_lea.vmem %s2, 24
        %v441 = vld [vmem:[%s440] sm:$0xff]
        %443 = vset.pattern.permute.xlu0 0
        %444 = vperm.xlu0 %443, %v441
        %v445 = vpop.permute.xlu0 %444
        %v447 = vmul.f32 %v445, %v345
        %v448 = vmul.f32 %v445, %v349
        %v449 = vmul.f32 %v445, %v353
        %v450 = vmul.f32 %v445, %v357
        %v451 = vmul.f32 %v445, %v361
        %457 = vrot.lane.b32.xlu0 %v447, 125
        %v458 = vpop.permute.xlu0 %457
        %459 = vrot.lane.b32.xlu0 %v448, 125
        %v460 = vpop.permute.xlu0 %459
        %461 = vrot.lane.b32.xlu0 %v449, 125
        %v462 = vpop.permute.xlu0 %461
        %463 = vrot.lane.b32.xlu0 %v450, 125
        %v464 = vpop.permute.xlu0 %463
        %465 = vrot.lane.b32.xlu0 %v451, 125
        %v466 = vpop.permute.xlu0 %465
        %vm467 = vcmask 1022976
        %v468 = vsel %vm467, %v458, %v460
        %v469 = vsel %vm467, %v460, %v462
        %v470 = vsel %vm467, %v462, %v464
        %v471 = vsel %vm467, %v464, %v466
        %v476 = vadd.f32 %v436, %v468
        %v477 = vadd.f32 %v437, %v469
        %v478 = vadd.f32 %v438, %v470
        %v479 = vadd.f32 %v439, %v471
        %s480 = scalar_lea.vmem %s2, 32
        %v481 = vld [vmem:[%s480] sm:$0xff]
        %483 = vset.pattern.permute.xlu0 0
        %484 = vperm.xlu0 %483, %v481
        %v485 = vpop.permute.xlu0 %484
        %v487 = vmul.f32 %v485, %v345
        %v488 = vmul.f32 %v485, %v349
        %v489 = vmul.f32 %v485, %v353
        %v490 = vmul.f32 %v485, %v357
        %v491 = vmul.f32 %v485, %v361
        %497 = vrot.lane.b32.xlu0 %v487, 124
        %v498 = vpop.permute.xlu0 %497
        %499 = vrot.lane.b32.xlu0 %v488, 124
        %v500 = vpop.permute.xlu0 %499
        %501 = vrot.lane.b32.xlu0 %v489, 124
        %v502 = vpop.permute.xlu0 %501
        %503 = vrot.lane.b32.xlu0 %v490, 124
        %v504 = vpop.permute.xlu0 %503
        %505 = vrot.lane.b32.xlu0 %v491, 124
        %v506 = vpop.permute.xlu0 %505
        %vm507 = vcmask 1014784
        %v508 = vsel %vm507, %v498, %v500
        %v509 = vsel %vm507, %v500, %v502
        %v510 = vsel %vm507, %v502, %v504
        %v511 = vsel %vm507, %v504, %v506
        %v516 = vadd.f32 %v476, %v508
        %v517 = vadd.f32 %v477, %v509
        %v518 = vadd.f32 %v478, %v510
        %v519 = vadd.f32 %v479, %v511
        %s520 = scalar_lea.vmem %s2, 40
        %v521 = vld [vmem:[%s520] sm:$0xff]
        %523 = vset.pattern.permute.xlu0 0
        %524 = vperm.xlu0 %523, %v521
        %v525 = vpop.permute.xlu0 %524
        %v527 = vmul.f32 %v525, %v345
        %v528 = vmul.f32 %v525, %v349
        %v529 = vmul.f32 %v525, %v353
        %v530 = vmul.f32 %v525, %v357
        %v531 = vmul.f32 %v525, %v361
        %537 = vrot.lane.b32.xlu0 %v527, 123
        %v538 = vpop.permute.xlu0 %537
        %539 = vrot.lane.b32.xlu0 %v528, 123
        %v540 = vpop.permute.xlu0 %539
        %541 = vrot.lane.b32.xlu0 %v529, 123
        %v542 = vpop.permute.xlu0 %541
        %543 = vrot.lane.b32.xlu0 %v530, 123
        %v544 = vpop.permute.xlu0 %543
        %545 = vrot.lane.b32.xlu0 %v531, 123
        %v546 = vpop.permute.xlu0 %545
        %vm547 = vcmask 1006592
        %v548 = vsel %vm547, %v538, %v540
        %v549 = vsel %vm547, %v540, %v542
        %v550 = vsel %vm547, %v542, %v544
        %v551 = vsel %vm547, %v544, %v546
        %v556 = vadd.f32 %v516, %v548
        %v557 = vadd.f32 %v517, %v549
        %v558 = vadd.f32 %v518, %v550
        %v559 = vadd.f32 %v519, %v551
        %s560 = scalar_lea.vmem %s2, 48
        %v561 = vld [vmem:[%s560] sm:$0xff]
        %563 = vset.pattern.permute.xlu0 0
        %564 = vperm.xlu0 %563, %v561
        %v565 = vpop.permute.xlu0 %564
        %v567 = vmul.f32 %v565, %v345
        %v568 = vmul.f32 %v565, %v349
        %v569 = vmul.f32 %v565, %v353
        %v570 = vmul.f32 %v565, %v357
        %v571 = vmul.f32 %v565, %v361
        %577 = vrot.lane.b32.xlu0 %v567, 122
        %v578 = vpop.permute.xlu0 %577
        %579 = vrot.lane.b32.xlu0 %v568, 122
        %v580 = vpop.permute.xlu0 %579
        %581 = vrot.lane.b32.xlu0 %v569, 122
        %v582 = vpop.permute.xlu0 %581
        %583 = vrot.lane.b32.xlu0 %v570, 122
        %v584 = vpop.permute.xlu0 %583
        %585 = vrot.lane.b32.xlu0 %v571, 122
        %v586 = vpop.permute.xlu0 %585
        %vm587 = vcmask 998400
        %v588 = vsel %vm587, %v578, %v580
        %v589 = vsel %vm587, %v580, %v582
        %v590 = vsel %vm587, %v582, %v584
        %v591 = vsel %vm587, %v584, %v586
        %v596 = vadd.f32 %v556, %v588
        %v597 = vadd.f32 %v557, %v589
        %v598 = vadd.f32 %v558, %v590
        %v599 = vadd.f32 %v559, %v591
        %s600 = scalar_lea.vmem %s2, 56
        %v601 = vld [vmem:[%s600] sm:$0xff]
        %603 = vset.pattern.permute.xlu0 0
        %604 = vperm.xlu0 %603, %v601
        %v605 = vpop.permute.xlu0 %604
        %v607 = vmul.f32 %v605, %v345
        %v608 = vmul.f32 %v605, %v349
        %v609 = vmul.f32 %v605, %v353
        %v610 = vmul.f32 %v605, %v357
        %v611 = vmul.f32 %v605, %v361
        %617 = vrot.lane.b32.xlu0 %v607, 121
        %v618 = vpop.permute.xlu0 %617
        %619 = vrot.lane.b32.xlu0 %v608, 121
        %v620 = vpop.permute.xlu0 %619
        %621 = vrot.lane.b32.xlu0 %v609, 121
        %v622 = vpop.permute.xlu0 %621
        %623 = vrot.lane.b32.xlu0 %v610, 121
        %v624 = vpop.permute.xlu0 %623
        %625 = vrot.lane.b32.xlu0 %v611, 121
        %v626 = vpop.permute.xlu0 %625
        %vm627 = vcmask 990208
        %v628 = vsel %vm627, %v618, %v620
        %v629 = vsel %vm627, %v620, %v622
        %v630 = vsel %vm627, %v622, %v624
        %v631 = vsel %vm627, %v624, %v626
        %v636 = vadd.f32 %v596, %v628
        %v637 = vadd.f32 %v597, %v629
        %v638 = vadd.f32 %v598, %v630
        %v639 = vadd.f32 %v599, %v631
        %s640 = scalar_lea.vmem %s2, 64
        %v641 = vld [vmem:[%s640] sm:$0xff]
        %643 = vset.pattern.permute.xlu0 0
        %644 = vperm.xlu0 %643, %v641
        %v645 = vpop.permute.xlu0 %644
        %v647 = vmul.f32 %v645, %v345
        %v648 = vmul.f32 %v645, %v349
        %v649 = vmul.f32 %v645, %v353
        %v650 = vmul.f32 %v645, %v357
        %v651 = vmul.f32 %v645, %v361
        %657 = vrot.lane.b32.xlu0 %v647, 120
        %v658 = vpop.permute.xlu0 %657
        %659 = vrot.lane.b32.xlu0 %v648, 120
        %v660 = vpop.permute.xlu0 %659
        %661 = vrot.lane.b32.xlu0 %v649, 120
        %v662 = vpop.permute.xlu0 %661
        %663 = vrot.lane.b32.xlu0 %v650, 120
        %v664 = vpop.permute.xlu0 %663
        %665 = vrot.lane.b32.xlu0 %v651, 120
        %v666 = vpop.permute.xlu0 %665
        %vm667 = vcmask 982016
        %v668 = vsel %vm667, %v658, %v660
        %v669 = vsel %vm667, %v660, %v662
        %v670 = vsel %vm667, %v662, %v664
        %v671 = vsel %vm667, %v664, %v666
        %v676 = vadd.f32 %v636, %v668
        %v677 = vadd.f32 %v637, %v669
        %v678 = vadd.f32 %v638, %v670
        %v679 = vadd.f32 %v639, %v671
        %s680 = scalar_lea.vmem %s2, 72
        %v681 = vld [vmem:[%s680] sm:$0xff]
        %683 = vset.pattern.permute.xlu0 0
        %684 = vperm.xlu0 %683, %v681
        %v685 = vpop.permute.xlu0 %684
        %v687 = vmul.f32 %v685, %v345
        %v688 = vmul.f32 %v685, %v349
        %v689 = vmul.f32 %v685, %v353
        %v690 = vmul.f32 %v685, %v357
        %v691 = vmul.f32 %v685, %v361
        %697 = vrot.lane.b32.xlu0 %v687, 119
        %v698 = vpop.permute.xlu0 %697
        %699 = vrot.lane.b32.xlu0 %v688, 119
        %v700 = vpop.permute.xlu0 %699
        %701 = vrot.lane.b32.xlu0 %v689, 119
        %v702 = vpop.permute.xlu0 %701
        %703 = vrot.lane.b32.xlu0 %v690, 119
        %v704 = vpop.permute.xlu0 %703
        %705 = vrot.lane.b32.xlu0 %v691, 119
        %v706 = vpop.permute.xlu0 %705
        %vm707 = vcmask 973824
        %v708 = vsel %vm707, %v698, %v700
        %v709 = vsel %vm707, %v700, %v702
        %v710 = vsel %vm707, %v702, %v704
        %v711 = vsel %vm707, %v704, %v706
        %v716 = vadd.f32 %v676, %v708
        %v717 = vadd.f32 %v677, %v709
        %v718 = vadd.f32 %v678, %v710
        %v719 = vadd.f32 %v679, %v711
        %s720 = scalar_lea.vmem %s2, 80
        %v721 = vld [vmem:[%s720] sm:$0xff]
        %723 = vset.pattern.permute.xlu0 0
        %724 = vperm.xlu0 %723, %v721
        %v725 = vpop.permute.xlu0 %724
        %v727 = vmul.f32 %v725, %v345
        %v728 = vmul.f32 %v725, %v349
        %v729 = vmul.f32 %v725, %v353
        %v730 = vmul.f32 %v725, %v357
        %v731 = vmul.f32 %v725, %v361
        %737 = vrot.lane.b32.xlu0 %v727, 118
        %v738 = vpop.permute.xlu0 %737
        %739 = vrot.lane.b32.xlu0 %v728, 118
        %v740 = vpop.permute.xlu0 %739
        %741 = vrot.lane.b32.xlu0 %v729, 118
        %v742 = vpop.permute.xlu0 %741
        %743 = vrot.lane.b32.xlu0 %v730, 118
        %v744 = vpop.permute.xlu0 %743
        %745 = vrot.lane.b32.xlu0 %v731, 118
        %v746 = vpop.permute.xlu0 %745
        %vm747 = vcmask 965632
        %v748 = vsel %vm747, %v738, %v740
        %v749 = vsel %vm747, %v740, %v742
        %v750 = vsel %vm747, %v742, %v744
        %v751 = vsel %vm747, %v744, %v746
        %v756 = vadd.f32 %v716, %v748
        %v757 = vadd.f32 %v717, %v749
        %v758 = vadd.f32 %v718, %v750
        %v759 = vadd.f32 %v719, %v751
        %s760 = scalar_lea.vmem %s2, 88
        %v761 = vld [vmem:[%s760] sm:$0xff]
        %763 = vset.pattern.permute.xlu0 0
        %764 = vperm.xlu0 %763, %v761
        %v765 = vpop.permute.xlu0 %764
        %v767 = vmul.f32 %v765, %v345
        %v768 = vmul.f32 %v765, %v349
        %v769 = vmul.f32 %v765, %v353
        %v770 = vmul.f32 %v765, %v357
        %v771 = vmul.f32 %v765, %v361
        %777 = vrot.lane.b32.xlu0 %v767, 117
        %v778 = vpop.permute.xlu0 %777
        %779 = vrot.lane.b32.xlu0 %v768, 117
        %v780 = vpop.permute.xlu0 %779
        %781 = vrot.lane.b32.xlu0 %v769, 117
        %v782 = vpop.permute.xlu0 %781
        %783 = vrot.lane.b32.xlu0 %v770, 117
        %v784 = vpop.permute.xlu0 %783
        %785 = vrot.lane.b32.xlu0 %v771, 117
        %v786 = vpop.permute.xlu0 %785
        %vm787 = vcmask 957440
        %v788 = vsel %vm787, %v778, %v780
        %v789 = vsel %vm787, %v780, %v782
        %v790 = vsel %vm787, %v782, %v784
        %v791 = vsel %vm787, %v784, %v786
        %v796 = vadd.f32 %v756, %v788
        %v797 = vadd.f32 %v757, %v789
        %v798 = vadd.f32 %v758, %v790
        %v799 = vadd.f32 %v759, %v791
        %s800 = scalar_lea.vmem %s2, 96
        %v801 = vld [vmem:[%s800] sm:$0xff]
        %803 = vset.pattern.permute.xlu0 0
        %804 = vperm.xlu0 %803, %v801
        %v805 = vpop.permute.xlu0 %804
        %v807 = vmul.f32 %v805, %v345
        %v808 = vmul.f32 %v805, %v349
        %v809 = vmul.f32 %v805, %v353
        %v810 = vmul.f32 %v805, %v357
        %v811 = vmul.f32 %v805, %v361
        %817 = vrot.lane.b32.xlu0 %v807, 116
        %v818 = vpop.permute.xlu0 %817
        %819 = vrot.lane.b32.xlu0 %v808, 116
        %v820 = vpop.permute.xlu0 %819
        %821 = vrot.lane.b32.xlu0 %v809, 116
        %v822 = vpop.permute.xlu0 %821
        %823 = vrot.lane.b32.xlu0 %v810, 116
        %v824 = vpop.permute.xlu0 %823
        %825 = vrot.lane.b32.xlu0 %v811, 116
        %v826 = vpop.permute.xlu0 %825
        %vm827 = vcmask 949248
        %v828 = vsel %vm827, %v818, %v820
        %v829 = vsel %vm827, %v820, %v822
        %v830 = vsel %vm827, %v822, %v824
        %v831 = vsel %vm827, %v824, %v826
        %v836 = vadd.f32 %v796, %v828
        %v837 = vadd.f32 %v797, %v829
        %v838 = vadd.f32 %v798, %v830
        %v839 = vadd.f32 %v799, %v831
        %s840 = scalar_lea.vmem %s2, 104
        %v841 = vld [vmem:[%s840] sm:$0xff]
        %843 = vset.pattern.permute.xlu0 0
        %844 = vperm.xlu0 %843, %v841
        %v845 = vpop.permute.xlu0 %844
        %v847 = vmul.f32 %v845, %v345
        %v848 = vmul.f32 %v845, %v349
        %v849 = vmul.f32 %v845, %v353
        %v850 = vmul.f32 %v845, %v357
        %v851 = vmul.f32 %v845, %v361
        %857 = vrot.lane.b32.xlu0 %v847, 115
        %v858 = vpop.permute.xlu0 %857
        %859 = vrot.lane.b32.xlu0 %v848, 115
        %v860 = vpop.permute.xlu0 %859
        %861 = vrot.lane.b32.xlu0 %v849, 115
        %v862 = vpop.permute.xlu0 %861
        %863 = vrot.lane.b32.xlu0 %v850, 115
        %v864 = vpop.permute.xlu0 %863
        %865 = vrot.lane.b32.xlu0 %v851, 115
        %v866 = vpop.permute.xlu0 %865
        %vm867 = vcmask 941056
        %v868 = vsel %vm867, %v858, %v860
        %v869 = vsel %vm867, %v860, %v862
        %v870 = vsel %vm867, %v862, %v864
        %v871 = vsel %vm867, %v864, %v866
        %v876 = vadd.f32 %v836, %v868
        %v877 = vadd.f32 %v837, %v869
        %v878 = vadd.f32 %v838, %v870
        %v879 = vadd.f32 %v839, %v871
        %s880 = scalar_lea.vmem %s2, 112
        %v881 = vld [vmem:[%s880] sm:$0xff]
        %883 = vset.pattern.permute.xlu0 0
        %884 = vperm.xlu0 %883, %v881
        %v885 = vpop.permute.xlu0 %884
        %v887 = vmul.f32 %v885, %v345
        %v888 = vmul.f32 %v885, %v349
        %v889 = vmul.f32 %v885, %v353
        %v890 = vmul.f32 %v885, %v357
        %v891 = vmul.f32 %v885, %v361
        %897 = vrot.lane.b32.xlu0 %v887, 114
        %v898 = vpop.permute.xlu0 %897
        %899 = vrot.lane.b32.xlu0 %v888, 114
        %v900 = vpop.permute.xlu0 %899
        %901 = vrot.lane.b32.xlu0 %v889, 114
        %v902 = vpop.permute.xlu0 %901
        %903 = vrot.lane.b32.xlu0 %v890, 114
        %v904 = vpop.permute.xlu0 %903
        %905 = vrot.lane.b32.xlu0 %v891, 114
        %v906 = vpop.permute.xlu0 %905
        %vm907 = vcmask 932864
        %v908 = vsel %vm907, %v898, %v900
        %v909 = vsel %vm907, %v900, %v902
        %v910 = vsel %vm907, %v902, %v904
        %v911 = vsel %vm907, %v904, %v906
        %v916 = vadd.f32 %v876, %v908
        %v917 = vadd.f32 %v877, %v909
        %v918 = vadd.f32 %v878, %v910
        %v919 = vadd.f32 %v879, %v911
        %921 = vset.pattern.permute.xlu0 0
        %922 = vperm.xlu0 %921, %v296
        %v923 = vpop.permute.xlu0 %922
        %v925 = vadd.f32 %v916, %v923
        %v926 = vadd.f32 %v917, %v923
        %v927 = vadd.f32 %v918, %v923
        %v928 = vadd.f32 %v919, %v923
        %vm929 = vcmp.ge.f32.partialorder %v925, 0.0
        %vm930 = vcmp.ge.f32.partialorder %v926, 0.0
        %vm931 = vcmp.ge.f32.partialorder %v927, 0.0
        %vm932 = vcmp.ge.f32.partialorder %v928, 0.0
        %v933 = vmul.f32 %v925, 0.2
        %v934 = vmul.f32 %v926, 0.2
        %v935 = vmul.f32 %v927, 0.2
        %v936 = vmul.f32 %v928, 0.2
        %v937 = vsel %vm929, %v925, %v933
        %v938 = vsel %vm930, %v926, %v934
        %v939 = vsel %vm931, %v927, %v935
        %v940 = vsel %vm932, %v928, %v936
        %941 = vst [vmem:[%s256] sm:$0xff] %v937
        %942 = vst [vmem:[%s256 + $0x8] sm:$0xff] %v938
        %943 = vst [vmem:[%s256 + $0x10] sm:$0xff] %v939
        %944 = vst [vmem:[%s256 + $0x18] sm:$0xff] %v940
        %s945 = sand.u32 %s142, 1
        %s946 = scalar_lea.sflag [#allocation4], %s945
        %s947 = sand.u32 %s142, 1
        %s948 = smul.addr %s947, 32
        %s949 = scalar_lea.vmem [#allocation3], %s948
        // Predicated region
        $region37: #{tpu_custom_call.1} parent=35 // pred_check
          %p950 = pneg %p152
        $region38: #{tpu_custom_call.1} parent=35 // pred_check_branch
          %952 = sbr.rel (%p950) target = $region40
        $region39: #{tpu_custom_call.1} parent=35 // pred_region
          %s953 = smul.u32 4, %s23
          %s955 = ssub.s32 512, 512
          %956 = vsyncadd %s946, %s955
          %s957 = smul.addr %s22, 4
          %s958 = sadd.s32 %s953, %s957
          %s959 = smul.addr %s958, 128
          %s960 = scalar_lea.hbm %s4, %s959
          %s962 = sshll.u32 %s949, 4
          %s963 = int_to_ptr.vmem [resolvable:$true] %s962
          %965 = dma.vmem_to_hbm [thread:$0]  %s963, 512, %s960, %s946
        $region40: #{tpu_custom_call.1} parent=35 // pred_fallthru
          _
      $region36: #{tpu_custom_call.1} parent=5 // pred_fallthru
        _
      %p966 = scmp.le.s32.totalorder 2, %s13
      // Predicated region
      $region41: #{tpu_custom_call.1} parent=5 // pred_check
        %p967 = pneg %p966
      $region42: #{tpu_custom_call.1} parent=5 // pred_check_branch
        %969 = sbr.rel (%p967) target = $region44
      $region43: #{tpu_custom_call.1} parent=5 // pred_region
        %s970 = ssub.s32 %s13, 2
        // Predicated region
        $region45: #{tpu_custom_call.1} parent=43 // pred_check
          %p971 = pneg %p158
        $region46: #{tpu_custom_call.1} parent=43 // pred_check_branch
          %973 = sbr.rel (%p971) target = $region48
        $region47: #{tpu_custom_call.1} parent=43 // pred_region
          %s974 = sand.u32 %s143, 1
          %s975 = scalar_lea.sflag [#allocation4], %s974
          %s976 = sand.u32 %s143, 1
          %s977 = smul.addr %s976, 32
          %s978 = scalar_lea.vmem [#allocation3], %s977
          %979 = dma.done %s975, 512
        $region48: #{tpu_custom_call.1} parent=43 // pred_fallthru
          _
      $region44: #{tpu_custom_call.1} parent=5 // pred_fallthru
        _
    $region6: #{tpu_custom_call.1} parent=1 // loop_footer
      %s17 = sadd.s32 1, %s13
    $region7: #{tpu_custom_call.1} parent=1 // loop_footer_branch
      %12 = sbr.rel target = $region3
    $region8: #{tpu_custom_call.1} parent=1 // loop_exit
      _
    %980 = vsyncpa [#allocation4], 1
    %s981 = scalar_lea.sflag [#allocation4], 1
    %982 = vsyncpa %s981, 1

</llo_original>
